<compile_context>
chip_gen: v6e
topology: v6e:2x2x1
jax: 0.10.0
libtpu: 0.0.40
codegen_flags: <defaults>
</compile_context>

<pallas_src>
import functools

import jax
import jax.numpy as jnp
from jax.experimental import pallas as pl
from jax.experimental.pallas import tpu as pltpu


def _round_up(x, m):
    return ((x + m - 1) // m) * m


def _num_tensorcores():
    """Best-effort TensorCore count per chip (v7x has 2, v5e/v6e have 1)."""
    try:
        kind = jax.devices()[0].device_kind.lower()
    except Exception:
        return 1
    return 2 if ("v7" in kind or "7x" in kind) else 1


def _softsign(z):
    # z / (1 + |z|).  approx=False lowers to a full-precision divide on the VALU;
    # that is fine here because the kernel is HBM/overhead-bound, not VALU-bound.
    # (approx=True would use the EUP vrcp but costs precision.)
    return z * pl.reciprocal(1.0 + jnp.abs(z), approx=False)


def _mlp_kernel(*refs, has_states, compute_dtype):
    if has_states:
        (xc_ref, xs_ref,
         w1c_ref, w1s_ref, b1_ref,
         w2_ref, b2_ref,
         w3_ref, b3_ref,
         wo_ref, bo_ref,
         o_ref) = refs
    else:
        (xc_ref,
         w1c_ref, b1_ref,
         w2_ref, b2_ref,
         w3_ref, b3_ref,
         wo_ref, bo_ref,
         o_ref) = refs

    # fc1: split contraction over (commands | states) feature blocks (fused concat).
    h = jnp.dot(w1c_ref[...], xc_ref[...], preferred_element_type=jnp.float32)
    if has_states:
        h = h + jnp.dot(w1s_ref[...], xs_ref[...],
                        preferred_element_type=jnp.float32)
    h = _softsign(h + b1_ref[...])

    h = _softsign(
        jnp.dot(w2_ref[...], h.astype(compute_dtype),
                preferred_element_type=jnp.float32) + b2_ref[...])
    h = _softsign(
        jnp.dot(w3_ref[...], h.astype(compute_dtype),
                preferred_element_type=jnp.float32) + b3_ref[...])

    y = jnp.dot(wo_ref[...], h.astype(compute_dtype),
                preferred_element_type=jnp.float32) + bo_ref[...]
    o_ref[...] = y.astype(o_ref.dtype)


def _choose_batch_tile(B, batch_tile, n_cores):
    """Pick the lane-axis tile size.  Returns (tb, grid_len)."""
    if B <= 128:
        return B, 1                       # single block == whole array; no padding needed
    # Largest in-bounds, 128-aligned tile not exceeding batch_tile.
    tb = min(int(batch_tile), (B // 128) * 128)
    tb = max(128, (tb // 128) * 128)
    n_blocks = pl.cdiv(B, tb)
    # On 2-TC parts (v7x) keep the grid length a multiple of the core count so both
    # cores get balanced work; single-TC parts (v5e/v6e) keep the fewest, biggest tiles.
    if n_cores > 1 and B >= 128 * n_cores and n_blocks % n_cores != 0:
        n_blocks = _round_up(n_blocks, n_cores)
        tb = max(128, _round_up(pl.cdiv(B, n_blocks), 128))
        tb = min(tb, (B // 128) * 128)
        n_blocks = pl.cdiv(B, tb)
    return tb, n_blocks


def actuator_network_forward(x_commands, params, x_states=None, *,
                             batch_tile=1024, compute_dtype=jnp.float32,
                             out_dtype=None, num_tensorcores=None):
    """Fused forward pass matching ActuatorNetwork.forward.

    params are in PyTorch nn.Linear layout:
      w1: (hidden, input_dim)   b1: (hidden, 1)
      w2: (hidden, hidden)      b2: (hidden, 1)
      w3: (hidden, hidden)      b3: (hidden, 1)
      wo: (output, hidden)      bo: (output, 1)
    """
    has_states = x_states is not None
    out_dtype = x_commands.dtype if out_dtype is None else out_dtype
    B, cmd_dim = x_commands.shape
    hidden_dim, input_dim = params["w1"].shape
    output_dim = params["wo"].shape[0]
    state_dim = x_states.shape[1] if has_states else 0
    assert cmd_dim + state_dim == input_dim, \
        "w1 in_features must match cat([x_commands, x_states], dim=1)"

    n_cores = _num_tensorcores() if num_tensorcores is None else int(num_tensorcores)
    tb, grid_len = _choose_batch_tile(B, batch_tile, n_cores)
    grid = (grid_len,)

    # Feature-major inputs (lane-dense loads).  astype + transpose fuse into a single
    # copy in XLA; no pad, no concat.  TODO(synk): drop these boundary transposes if the
    # surrounding model can consume/produce feature-major (features, batch) tensors.
    def to_feature_major(a):
        return jnp.transpose(a.astype(compute_dtype))     # (features, B)

    operands = [to_feature_major(x_commands)]
    if has_states:
        operands.append(to_feature_major(x_states))

    w1 = params["w1"].astype(compute_dtype)
    w1c, w1s = w1[:, :cmd_dim], w1[:, cmd_dim:]
    weights = [w1c] + ([w1s] if has_states else []) + [
        params["b1"].astype(jnp.float32),
        params["w2"].astype(compute_dtype), params["b2"].astype(jnp.float32),
        params["w3"].astype(compute_dtype), params["b3"].astype(jnp.float32),
        params["wo"].astype(compute_dtype), params["bo"].astype(jnp.float32),
    ]
    operands += weights

    def x_spec(feat):
        return pl.BlockSpec((feat, tb), lambda i: (0, i))

    def rep(a):
        # Grid-invariant (constant index_map) -> DMA'd once, no re-fetch per step.
        # (pipeline_mode=pl.Buffered(1) would drop the redundant second buffer; the
        #  VMEM saving is negligible here, so keep the default for robustness.)
        return pl.BlockSpec(a.shape, lambda i: (0, 0))

    in_specs = [x_spec(cmd_dim)]
    if has_states:
        in_specs.append(x_spec(state_dim))
    in_specs += [rep(w) for w in weights]

    out_spec = pl.BlockSpec((output_dim, tb), lambda i: (0, i))

    # Advisory cost hint so XLA schedules the boundary transposes around the call.
    flops = 2 * B * (input_dim * hidden_dim
                     + 2 * hidden_dim * hidden_dim
                     + hidden_dim * output_dim)
    transcendentals = 3 * hidden_dim * B
    w_bytes = sum(int(w.size) * w.dtype.itemsize for w in weights)
    bytes_accessed = (B * input_dim * jnp.dtype(compute_dtype).itemsize
                      + B * output_dim * jnp.dtype(out_dtype).itemsize
                      + w_bytes)
    cost = pl.CostEstimate(flops=flops, transcendentals=transcendentals,
                           bytes_accessed=bytes_accessed)

    kernel = functools.partial(_mlp_kernel, has_states=has_states,
                               compute_dtype=compute_dtype)

    outT = pl.pallas_call(
        kernel,
        out_shape=jax.ShapeDtypeStruct((output_dim, B), out_dtype),
        grid_spec=pltpu.PrefetchScalarGridSpec(
            num_scalar_prefetch=0,
            grid=grid,
            in_specs=in_specs,
            out_specs=out_spec,
        ),
        compiler_params=pltpu.CompilerParams(
            dimension_semantics=("parallel",),
        ),
        cost_estimate=cost,
    )(*operands)

    return outT.T                                        # (batch, output_dim)


def init_params(key, input_dim, hidden_dim, output_dim, dtype=jnp.float32):
    """Synthetic init mimicking nn.Linear's U(-1/sqrt(fan_in), +), PyTorch layout."""
    dims = [(input_dim, hidden_dim), (hidden_dim, hidden_dim),
            (hidden_dim, hidden_dim), (hidden_dim, output_dim)]
    names = ["1", "2", "3", "o"]
    params = {}
    for (fan_in, fan_out), n in zip(dims, names):
        key, kw, kb = jax.random.split(key, 3)
        bound = 1.0 / float(fan_in) ** 0.5
        params[f"w{n}"] = jax.random.uniform(
            kw, (fan_out, fan_in), dtype=dtype, minval=-bound, maxval=bound)
        params[f"b{n}"] = jax.random.uniform(
            kb, (fan_out, 1), dtype=dtype, minval=-bound, maxval=bound)
    return params


def _reference_forward(x_commands, params, x_states=None):
    x = (jnp.concatenate([x_commands, x_states], axis=1)
         if x_states is not None else x_commands)

    def lin(h, w, b):
        return h @ w.T + b.T

    h = x
    for n in ["1", "2", "3"]:
        h = lin(h, params[f"w{n}"], params[f"b{n}"])
        h = h / (1.0 + jnp.abs(h))
    return lin(h, params["wo"], params["bo"])


if __name__ == "__main__":
    batch = 256
    cmd_dim, state_dim = 4, 4
    input_dim = cmd_dim + state_dim
    hidden_dim, output_dim = 32, 4

    key = jax.random.PRNGKey(0)
    key, k_cmd, k_state = jax.random.split(key, 3)
    x_commands = jax.random.normal(k_cmd, (batch, cmd_dim), dtype=jnp.float32)
    x_states = jax.random.normal(k_state, (batch, state_dim), dtype=jnp.float32)
    params = init_params(key, input_dim, hidden_dim, output_dim)

    ref = _reference_forward(x_commands, params, x_states)

    # f32 path (commands + states).
    out = jax.block_until_ready(
        actuator_network_forward(x_commands, params, x_states))
    assert out.shape == (batch, output_dim)
    assert jnp.allclose(out, ref, atol=1e-4, rtol=1e-4), "f32 kernel mismatch vs reference"

    # x_states=None path (pre-concatenated input).
    x_full = jnp.concatenate([x_commands, x_states], axis=1)
    out_nostate = jax.block_until_ready(
        actuator_network_forward(x_full, params, None))
    assert jnp.allclose(out_nostate, ref, atol=1e-4, rtol=1e-4), "no-states kernel mismatch"

    # Ragged batch (not a multiple of 128) — no wrapper-side padding, ragged last block.
    rb = 200
    out_ragged = jax.block_until_ready(
        actuator_network_forward(x_commands[:rb], params, x_states[:rb]))
    assert out_ragged.shape == (rb, output_dim)
    assert jnp.allclose(out_ragged, ref[:rb], atol=1e-4, rtol=1e-4), "ragged-batch mismatch"

    # bf16 compute + bf16 I/O path (f32 accumulation) — looser tolerance by construction.
    out_bf16 = jax.block_until_ready(
        actuator_network_forward(x_commands, params, x_states,
                                 compute_dtype=jnp.bfloat16,
                                 out_dtype=jnp.bfloat16))
    assert float(jnp.max(jnp.abs(out_bf16.astype(jnp.float32) - ref))) < 0.1, \
        "bf16 kernel mismatch vs reference"

    print("KERNEL_OK")
</pallas_src>

<mosaic_0001>
module attributes {stable_mosaic.version = 11 : i64} {
  func.func @_mlp_kernel(%arg0: i32, %arg1: memref<4x256xf32, #tpu.memory_space<vmem>>, %arg2: memref<4x256xf32, #tpu.memory_space<vmem>>, %arg3: memref<32x4xf32, #tpu.memory_space<vmem>>, %arg4: memref<32x4xf32, #tpu.memory_space<vmem>>, %arg5: memref<32x1xf32, #tpu.memory_space<vmem>>, %arg6: memref<32x32xf32, #tpu.memory_space<vmem>>, %arg7: memref<32x1xf32, #tpu.memory_space<vmem>>, %arg8: memref<32x32xf32, #tpu.memory_space<vmem>>, %arg9: memref<32x1xf32, #tpu.memory_space<vmem>>, %arg10: memref<4x32xf32, #tpu.memory_space<vmem>>, %arg11: memref<4x1xf32, #tpu.memory_space<vmem>>, %arg12: memref<4x256xf32, #tpu.memory_space<vmem>>) attributes {dimension_semantics = [#tpu.dimension_semantics<parallel>], iteration_bounds = array<i64: 1>, scalar_prefetch = 0 : i64, scratch_operands = 0 : i64, tpu.core_type = #tpu.core_type<tc>, window_params = [{transform_indices = @transform_0, window_bounds = array<i64: 4, 256>}, {transform_indices = @transform_1, window_bounds = array<i64: 4, 256>}, {pipeline_mode = #tpu.pipeline_mode<synchronous>, transform_indices = @transform_2, window_bounds = array<i64: 32, 4>}, {pipeline_mode = #tpu.pipeline_mode<synchronous>, transform_indices = @transform_3, window_bounds = array<i64: 32, 4>}, {pipeline_mode = #tpu.pipeline_mode<synchronous>, transform_indices = @transform_4, window_bounds = array<i64: 32, 1>}, {pipeline_mode = #tpu.pipeline_mode<synchronous>, transform_indices = @transform_5, window_bounds = array<i64: 32, 32>}, {pipeline_mode = #tpu.pipeline_mode<synchronous>, transform_indices = @transform_6, window_bounds = array<i64: 32, 1>}, {pipeline_mode = #tpu.pipeline_mode<synchronous>, transform_indices = @transform_7, window_bounds = array<i64: 32, 32>}, {pipeline_mode = #tpu.pipeline_mode<synchronous>, transform_indices = @transform_8, window_bounds = array<i64: 32, 1>}, {pipeline_mode = #tpu.pipeline_mode<synchronous>, transform_indices = @transform_9, window_bounds = array<i64: 4, 32>}, {pipeline_mode = #tpu.pipeline_mode<synchronous>, transform_indices = @transform_10, window_bounds = array<i64: 4, 1>}, {transform_indices = @transform_11, window_bounds = array<i64: 4, 256>}]} {
    %c0 = arith.constant 0 : index
    %c0_0 = arith.constant 0 : index
    %0 = vector.load %arg3[%c0, %c0_0] : memref<32x4xf32, #tpu.memory_space<vmem>>, vector<32x4xf32>
    %c0_1 = arith.constant 0 : index
    %c0_2 = arith.constant 0 : index
    %1 = vector.load %arg1[%c0_1, %c0_2] : memref<4x256xf32, #tpu.memory_space<vmem>>, vector<4x256xf32>
    %cst = arith.constant dense<0.000000e+00> : vector<32x256xf32>
    %2 = tpu.matmul %0, %1, %cst {dimension_numbers = #tpu.dot_dimension_numbers<[1], [0], [0], [1], [0, 0, 1, 1], [], []>} : vector<32x4xf32>, vector<4x256xf32>, vector<32x256xf32> -> vector<32x256xf32>
    %c0_3 = arith.constant 0 : index
    %c0_4 = arith.constant 0 : index
    %3 = vector.load %arg4[%c0_3, %c0_4] : memref<32x4xf32, #tpu.memory_space<vmem>>, vector<32x4xf32>
    %c0_5 = arith.constant 0 : index
    %c0_6 = arith.constant 0 : index
    %4 = vector.load %arg2[%c0_5, %c0_6] : memref<4x256xf32, #tpu.memory_space<vmem>>, vector<4x256xf32>
    %cst_7 = arith.constant dense<0.000000e+00> : vector<32x256xf32>
    %5 = tpu.matmul %3, %4, %cst_7 {dimension_numbers = #tpu.dot_dimension_numbers<[1], [0], [0], [1], [0, 0, 1, 1], [], []>} : vector<32x4xf32>, vector<4x256xf32>, vector<32x256xf32> -> vector<32x256xf32>
    %6 = arith.addf %2, %5 : vector<32x256xf32>
    %c0_8 = arith.constant 0 : index
    %c0_9 = arith.constant 0 : index
    %7 = vector.load %arg5[%c0_8, %c0_9] : memref<32x1xf32, #tpu.memory_space<vmem>>, vector<32x1xf32>
    %8 = vector.broadcast %7 : vector<32x1xf32> to vector<32x256xf32>
    %9 = arith.addf %6, %8 : vector<32x256xf32>
    %10 = math.absf %9 : vector<32x256xf32>
    %cst_10 = arith.constant 1.000000e+00 : f32
    %11 = vector.broadcast %cst_10 : f32 to vector<32x256xf32>
    %12 = arith.addf %11, %10 : vector<32x256xf32>
    %13 = tpu.reciprocal %12 : vector<32x256xf32> -> vector<32x256xf32>
    %14 = arith.mulf %9, %13 : vector<32x256xf32>
    %c0_11 = arith.constant 0 : index
    %c0_12 = arith.constant 0 : index
    %15 = vector.load %arg6[%c0_11, %c0_12] : memref<32x32xf32, #tpu.memory_space<vmem>>, vector<32x32xf32>
    %cst_13 = arith.constant dense<0.000000e+00> : vector<32x256xf32>
    %16 = tpu.matmul %15, %14, %cst_13 {dimension_numbers = #tpu.dot_dimension_numbers<[1], [0], [0], [1], [0, 0, 1, 1], [], []>} : vector<32x32xf32>, vector<32x256xf32>, vector<32x256xf32> -> vector<32x256xf32>
    %c0_14 = arith.constant 0 : index
    %c0_15 = arith.constant 0 : index
    %17 = vector.load %arg7[%c0_14, %c0_15] : memref<32x1xf32, #tpu.memory_space<vmem>>, vector<32x1xf32>
    %18 = vector.broadcast %17 : vector<32x1xf32> to vector<32x256xf32>
    %19 = arith.addf %16, %18 : vector<32x256xf32>
    %20 = math.absf %19 : vector<32x256xf32>
    %cst_16 = arith.constant 1.000000e+00 : f32
    %21 = vector.broadcast %cst_16 : f32 to vector<32x256xf32>
    %22 = arith.addf %21, %20 : vector<32x256xf32>
    %23 = tpu.reciprocal %22 : vector<32x256xf32> -> vector<32x256xf32>
    %24 = arith.mulf %19, %23 : vector<32x256xf32>
    %c0_17 = arith.constant 0 : index
    %c0_18 = arith.constant 0 : index
    %25 = vector.load %arg8[%c0_17, %c0_18] : memref<32x32xf32, #tpu.memory_space<vmem>>, vector<32x32xf32>
    %cst_19 = arith.constant dense<0.000000e+00> : vector<32x256xf32>
    %26 = tpu.matmul %25, %24, %cst_19 {dimension_numbers = #tpu.dot_dimension_numbers<[1], [0], [0], [1], [0, 0, 1, 1], [], []>} : vector<32x32xf32>, vector<32x256xf32>, vector<32x256xf32> -> vector<32x256xf32>
    %c0_20 = arith.constant 0 : index
    %c0_21 = arith.constant 0 : index
    %27 = vector.load %arg9[%c0_20, %c0_21] : memref<32x1xf32, #tpu.memory_space<vmem>>, vector<32x1xf32>
    %28 = vector.broadcast %27 : vector<32x1xf32> to vector<32x256xf32>
    %29 = arith.addf %26, %28 : vector<32x256xf32>
    %30 = math.absf %29 : vector<32x256xf32>
    %cst_22 = arith.constant 1.000000e+00 : f32
    %31 = vector.broadcast %cst_22 : f32 to vector<32x256xf32>
    %32 = arith.addf %31, %30 : vector<32x256xf32>
    %33 = tpu.reciprocal %32 : vector<32x256xf32> -> vector<32x256xf32>
    %34 = arith.mulf %29, %33 : vector<32x256xf32>
    %c0_23 = arith.constant 0 : index
    %c0_24 = arith.constant 0 : index
    %35 = vector.load %arg10[%c0_23, %c0_24] : memref<4x32xf32, #tpu.memory_space<vmem>>, vector<4x32xf32>
    %cst_25 = arith.constant dense<0.000000e+00> : vector<4x256xf32>
    %36 = tpu.matmul %35, %34, %cst_25 {dimension_numbers = #tpu.dot_dimension_numbers<[1], [0], [0], [1], [0, 0, 1, 1], [], []>} : vector<4x32xf32>, vector<32x256xf32>, vector<4x256xf32> -> vector<4x256xf32>
    %c0_26 = arith.constant 0 : index
    %c0_27 = arith.constant 0 : index
    %37 = vector.load %arg11[%c0_26, %c0_27] : memref<4x1xf32, #tpu.memory_space<vmem>>, vector<4x1xf32>
    %38 = vector.broadcast %37 : vector<4x1xf32> to vector<4x256xf32>
    %39 = arith.addf %36, %38 : vector<4x256xf32>
    %c0_28 = arith.constant 0 : index
    %c0_29 = arith.constant 0 : index
    %40 = vector.load %arg12[%c0_28, %c0_29] : memref<4x256xf32, #tpu.memory_space<vmem>>, vector<4x256xf32>
    tpu.vector_store %arg12[%c0_28, %c0_29], %39 {strides = array<i32>} : memref<4x256xf32, #tpu.memory_space<vmem>>, vector<4x256xf32>,
    return
  }
  func.func @transform_0(%arg0: i32) -> (i32, i32) {
    %c0_i32 = arith.constant 0 : i32
    %c0_i32_0 = arith.constant 0 : i32
    return %c0_i32, %arg0 : i32, i32
  }
  func.func @transform_1(%arg0: i32) -> (i32, i32) {
    %c0_i32 = arith.constant 0 : i32
    %c0_i32_0 = arith.constant 0 : i32
    return %c0_i32, %arg0 : i32, i32
  }
  func.func @transform_2(%arg0: i32) -> (i32, i32) {
    %c0_i32 = arith.constant 0 : i32
    %c0_i32_0 = arith.constant 0 : i32
    %c0_i32_1 = arith.constant 0 : i32
    return %c0_i32, %c0_i32_0 : i32, i32
  }
  func.func @transform_3(%arg0: i32) -> (i32, i32) {
    %c0_i32 = arith.constant 0 : i32
    %c0_i32_0 = arith.constant 0 : i32
    %c0_i32_1 = arith.constant 0 : i32
    return %c0_i32, %c0_i32_0 : i32, i32
  }
  func.func @transform_4(%arg0: i32) -> (i32, i32) {
    %c0_i32 = arith.constant 0 : i32
    %c0_i32_0 = arith.constant 0 : i32
    %c0_i32_1 = arith.constant 0 : i32
    return %c0_i32, %c0_i32_0 : i32, i32
  }
  func.func @transform_5(%arg0: i32) -> (i32, i32) {
    %c0_i32 = arith.constant 0 : i32
    %c0_i32_0 = arith.constant 0 : i32
    %c0_i32_1 = arith.constant 0 : i32
    return %c0_i32, %c0_i32_0 : i32, i32
  }
  func.func @transform_6(%arg0: i32) -> (i32, i32) {
    %c0_i32 = arith.constant 0 : i32
    %c0_i32_0 = arith.constant 0 : i32
    %c0_i32_1 = arith.constant 0 : i32
    return %c0_i32, %c0_i32_0 : i32, i32
  }
  func.func @transform_7(%arg0: i32) -> (i32, i32) {
    %c0_i32 = arith.constant 0 : i32
    %c0_i32_0 = arith.constant 0 : i32
    %c0_i32_1 = arith.constant 0 : i32
    return %c0_i32, %c0_i32_0 : i32, i32
  }
  func.func @transform_8(%arg0: i32) -> (i32, i32) {
    %c0_i32 = arith.constant 0 : i32
    %c0_i32_0 = arith.constant 0 : i32
    %c0_i32_1 = arith.constant 0 : i32
    return %c0_i32, %c0_i32_0 : i32, i32
  }
  func.func @transform_9(%arg0: i32) -> (i32, i32) {
    %c0_i32 = arith.constant 0 : i32
    %c0_i32_0 = arith.constant 0 : i32
    %c0_i32_1 = arith.constant 0 : i32
    return %c0_i32, %c0_i32_0 : i32, i32
  }
  func.func @transform_10(%arg0: i32) -> (i32, i32) {
    %c0_i32 = arith.constant 0 : i32
    %c0_i32_0 = arith.constant 0 : i32
    %c0_i32_1 = arith.constant 0 : i32
    return %c0_i32, %c0_i32_0 : i32, i32
  }
  func.func @transform_11(%arg0: i32) -> (i32, i32) {
    %c0_i32 = arith.constant 0 : i32
    %c0_i32_0 = arith.constant 0 : i32
    return %c0_i32, %arg0 : i32, i32
  }
}

</mosaic_0001>

<llo_original>
// kernel: tpu_custom_call.1
$region0: #{tpu_custom_call.1}
  #allocation0 [shape = 'u32[]', space=smem, size = 0x4, offset = 0x4, fixed_abs, tag = 'smem constant byte address 0x4 - core index']
  #allocation1 [shape = 'u32[144,128]{1,0:T(1,128)}', space=vmem, size = 0x12000, scoped, tag = 'internal scratch']
  %s0 = inlined_call_operand.vmem [shape: f32[4,256], index: 0, kind: input, shape index: {}]
  %s1 = inlined_call_operand.vmem [shape: f32[4,256], index: 1, kind: input, shape index: {}]
  %s2 = inlined_call_operand.vmem [shape: f32[32,4], index: 2, kind: input, shape index: {}]
  %s3 = inlined_call_operand.vmem [shape: f32[32,4], index: 3, kind: input, shape index: {}]
  %s4 = inlined_call_operand.vmem [shape: f32[32,1], index: 4, kind: input, shape index: {}]
  %s5 = inlined_call_operand.vmem [shape: f32[32,32], index: 5, kind: input, shape index: {}]
  %s6 = inlined_call_operand.vmem [shape: f32[32,1], index: 6, kind: input, shape index: {}]
  %s7 = inlined_call_operand.vmem [shape: f32[32,32], index: 7, kind: input, shape index: {}]
  %s8 = inlined_call_operand.vmem [shape: f32[32,1], index: 8, kind: input, shape index: {}]
  %s9 = inlined_call_operand.vmem [shape: f32[4,32], index: 9, kind: input, shape index: {}]
  %s10 = inlined_call_operand.vmem [shape: f32[4,1], index: 10, kind: input, shape index: {}]
  %s11 = inlined_call_operand.hbm [shape: f32[4,256], index: 11, kind: output, shape index: {}]
  %s12 = sld [smem:[#allocation0]]
  $region54: #{tpu_custom_call.1} parent=0
    _
  %s14 = ssub.s32 1, %s12
  %s15 = scalar_select 0, %s14, %s12
  $region1: #{tpu_custom_call.1} parent=0
    #allocation2 [shape = 'u8[4096]{0}', space=vmem, size = 0x1000, scoped, tag = 'output window, operand 0, single buffered']
    #allocation3 [shape = 's32[1]{0}', space=sflag, size = 0x4, scoped, tag = 'scoped memory for tpu_custom_call.1']
    %16 = vsyncpa [#allocation3], 0
    // Predicated region
    $region2: #{tpu_custom_call.1} parent=1 // pred_check
      _
    $region3: #{tpu_custom_call.1} parent=1 // pred_check_branch
      %18 = sbr.rel (0) target = $region5
    $region4: #{tpu_custom_call.1} parent=1 // pred_region
      _
    $region5: #{tpu_custom_call.1} parent=1 // pred_fallthru
      _
    // Predicated region
    $region6: #{tpu_custom_call.1} parent=1 // pred_check
      _
    $region7: #{tpu_custom_call.1} parent=1 // pred_check_branch
      %20 = sbr.rel (0) target = $region9
    $region8: #{tpu_custom_call.1} parent=1 // pred_region
      _
    $region9: #{tpu_custom_call.1} parent=1 // pred_fallthru
      _
    // Predicated region
    $region10: #{tpu_custom_call.1} parent=1 // pred_check
      _
    $region11: #{tpu_custom_call.1} parent=1 // pred_check_branch
      %22 = sbr.rel (0) target = $region13
    $region12: #{tpu_custom_call.1} parent=1 // pred_region
      _
    $region13: #{tpu_custom_call.1} parent=1 // pred_fallthru
      _
    // Predicated region
    $region14: #{tpu_custom_call.1} parent=1 // pred_check
      _
    $region15: #{tpu_custom_call.1} parent=1 // pred_check_branch
      %24 = sbr.rel (0) target = $region17
    $region16: #{tpu_custom_call.1} parent=1 // pred_region
      _
    $region17: #{tpu_custom_call.1} parent=1 // pred_fallthru
      _
    // Predicated region
    $region18: #{tpu_custom_call.1} parent=1 // pred_check
      _
    $region19: #{tpu_custom_call.1} parent=1 // pred_check_branch
      %26 = sbr.rel (0) target = $region21
    $region20: #{tpu_custom_call.1} parent=1 // pred_region
      _
    $region21: #{tpu_custom_call.1} parent=1 // pred_fallthru
      _
    // Predicated region
    $region22: #{tpu_custom_call.1} parent=1 // pred_check
      _
    $region23: #{tpu_custom_call.1} parent=1 // pred_check_branch
      %28 = sbr.rel (0) target = $region25
    $region24: #{tpu_custom_call.1} parent=1 // pred_region
      _
    $region25: #{tpu_custom_call.1} parent=1 // pred_fallthru
      _
    // Predicated region
    $region26: #{tpu_custom_call.1} parent=1 // pred_check
      _
    $region27: #{tpu_custom_call.1} parent=1 // pred_check_branch
      %30 = sbr.rel (0) target = $region29
    $region28: #{tpu_custom_call.1} parent=1 // pred_region
      _
    $region29: #{tpu_custom_call.1} parent=1 // pred_fallthru
      _
    // Predicated region
    $region30: #{tpu_custom_call.1} parent=1 // pred_check
      _
    $region31: #{tpu_custom_call.1} parent=1 // pred_check_branch
      %32 = sbr.rel (0) target = $region33
    $region32: #{tpu_custom_call.1} parent=1 // pred_region
      _
    $region33: #{tpu_custom_call.1} parent=1 // pred_fallthru
      _
    // Predicated region
    $region34: #{tpu_custom_call.1} parent=1 // pred_check
      _
    $region35: #{tpu_custom_call.1} parent=1 // pred_check_branch
      %34 = sbr.rel (0) target = $region37
    $region36: #{tpu_custom_call.1} parent=1 // pred_region
      _
    $region37: #{tpu_custom_call.1} parent=1 // pred_fallthru
      _
    // Predicated region
    $region38: #{tpu_custom_call.1} parent=1 // pred_check
      _
    $region39: #{tpu_custom_call.1} parent=1 // pred_check_branch
      %36 = sbr.rel (0) target = $region41
    $region40: #{tpu_custom_call.1} parent=1 // pred_region
      _
    $region41: #{tpu_custom_call.1} parent=1 // pred_fallthru
      _
    // Predicated region
    $region42: #{tpu_custom_call.1} parent=1 // pred_check
      _
    $region43: #{tpu_custom_call.1} parent=1 // pred_check_branch
      %38 = sbr.rel (0) target = $region45
    $region44: #{tpu_custom_call.1} parent=1 // pred_region
      _
    $region45: #{tpu_custom_call.1} parent=1 // pred_fallthru
      _
    %v39 = vld [vmem:[%s2] sm:$0xff]
    %v40 = vld [vmem:[%s2 + $0x8] sm:$0xff]
    %v41 = vld [vmem:[%s2 + $0x10] sm:$0xff]
    %v42 = vld [vmem:[%s2 + $0x18] sm:$0xff]
    %v43 = vld [vmem:[%s0] sm:$0xff]
    %v44 = vld [vmem:[%s3] sm:$0xff]
    %v45 = vld [vmem:[%s3 + $0x8] sm:$0xff]
    %v46 = vld [vmem:[%s3 + $0x10] sm:$0xff]
    %v47 = vld [vmem:[%s3 + $0x18] sm:$0xff]
    %v48 = vld [vmem:[%s1] sm:$0xff]
    %v50 = vcombine.high %v48, %v48
    %vm51 = vcmask 31744
    %v53 = vsel %vm51, %v44, 0
    %v56 = vsel %vm51, %v45, 0
    %v59 = vsel %vm51, %v46, 0
    %v62 = vsel %vm51, %v47, 0
    %vm64 = vcmask 1043456
    %v65 = vsel %vm64, %v48, 0
    %v67 = vsel %vm64, %v50, 0
    %69 = vmatprep.subr.mxu0 0.0
    %70 = vmatpush1.msra.mxu0 0.0
    %71 = vmatprep.subr.mxu0 0.0
    %72 = vmatpush1.msra.mxu0 0.0
    %73 = vmatprep.subr.mxu0 0.0
    %74 = vmatpush1.msra.mxu0 0.0
    %75 = vmatprep.subr.mxu0 0.0
    %76 = vmatpush1.msra.mxu0 0.0
    %77 = vmatprep.subr.mxu0 0.0
    %78 = vmatpush1.msra.mxu0 0.0
    %79 = vmatprep.subr.mxu0 0.0
    %80 = vmatpush1.msra.mxu0 0.0
    %81 = vmatprep.subr.mxu0 0.0
    %82 = vmatpush1.msra.mxu0 0.0
    %83 = vmatprep.subr.mxu0 0.0
    %84 = vmatpush1.msra.mxu0 0.0
    %85 = vmatprep.subr.mxu0 0.0
    %86 = vmatpush1.msra.mxu0 0.0
    %87 = vmatprep.subr.mxu0 0.0
    %88 = vmatpush1.msra.mxu0 0.0
    %89 = vmatprep.subr.mxu0 0.0
    %90 = vmatpush1.msra.mxu0 0.0
    %91 = vmatprep.subr.mxu0 0.0
    %92 = vmatpush1.msra.mxu0 0.0
    %93 = vmatprep.subr.mxu0 0.0
    %94 = vmatpush1.msra.mxu0 0.0
    %95 = vmatprep.subr.mxu0 0.0
    %96 = vmatpush1.msra.mxu0 0.0
    %97 = vmatprep.subr.mxu0 0.0
    %98 = vmatpush1.msra.mxu0 0.0
    %99 = vmatprep.subr.mxu0 %v67
    %100 = vmatpush1.msra.mxu0 %v65
    %101 = vmatprep.subr.mxu0 0.0
    %102 = vmatpush2.msra.mxu0 0.0
    %103 = vmatprep.subr.mxu0 0.0
    %104 = vmatpush2.msra.mxu0 0.0
    %105 = vmatprep.subr.mxu0 0.0
    %106 = vmatpush2.msra.mxu0 0.0
    %107 = vmatprep.subr.mxu0 0.0
    %108 = vmatpush2.msra.mxu0 0.0
    %109 = vmatprep.subr.mxu0 0.0
    %110 = vmatpush2.msra.mxu0 0.0
    %111 = vmatprep.subr.mxu0 0.0
    %112 = vmatpush2.msra.mxu0 0.0
    %113 = vmatprep.subr.mxu0 0.0
    %114 = vmatpush2.msra.mxu0 0.0
    %115 = vmatprep.subr.mxu0 0.0
    %116 = vmatpush2.msra.mxu0 0.0
    %117 = vmatprep.subr.mxu0 0.0
    %118 = vmatpush2.msra.mxu0 0.0
    %119 = vmatprep.subr.mxu0 0.0
    %120 = vmatpush2.msra.mxu0 0.0
    %121 = vmatprep.subr.mxu0 0.0
    %122 = vmatpush2.msra.mxu0 0.0
    %123 = vmatprep.subr.mxu0 0.0
    %124 = vmatpush2.msra.mxu0 0.0
    %125 = vmatprep.subr.mxu0 0.0
    %126 = vmatpush2.msra.mxu0 0.0
    %127 = vmatprep.subr.mxu0 0.0
    %128 = vmatpush2.msra.mxu0 0.0
    %129 = vmatprep.subr.mxu0 0.0
    %130 = vmatpush2.msra.mxu0 0.0
    %131 = vmatprep.subr.mxu0 0.0
    %132 = vmatpush2.msra.mxu0 0.0
    %133 = vmatprep.mubr.f32.mxu0 0.0
    %134 = vmatmul.mubr.f32.gmra.mxu0 %v53
    %v135 = vpop.f32.mrf.mxu0
    %v136 = vadd.f32 0.0, %v135
    %v137 = vpop.f32.mrf.mxu0
    %v138 = vadd.f32 0.0, %v137
    %139 = vmatprep.mubr.f32.mxu0 0.0
    %140 = vmatmul.mubr.f32.gmra.mxu0 %v56
    %v141 = vpop.f32.mrf.mxu0
    %v142 = vadd.f32 0.0, %v141
    %v143 = vpop.f32.mrf.mxu0
    %v144 = vadd.f32 0.0, %v143
    %145 = vmatprep.mubr.f32.mxu0 0.0
    %146 = vmatmul.mubr.f32.gmra.mxu0 %v59
    %v147 = vpop.f32.mrf.mxu0
    %v148 = vadd.f32 0.0, %v147
    %v149 = vpop.f32.mrf.mxu0
    %v150 = vadd.f32 0.0, %v149
    %151 = vmatprep.mubr.f32.mxu0 0.0
    %152 = vmatmul.mubr.f32.gmra.mxu0 %v62
    %v153 = vpop.f32.mrf.mxu0
    %v154 = vadd.f32 0.0, %v153
    %v155 = vpop.f32.mrf.mxu0
    %v156 = vadd.f32 0.0, %v155
    %157 = vdwg.mxu0
    %v159 = vcombine.high %v43, %v43
    %v161 = vsel %vm51, %v39, 0
    %v164 = vsel %vm51, %v40, 0
    %v167 = vsel %vm51, %v41, 0
    %v170 = vsel %vm51, %v42, 0
    %v172 = vsel %vm64, %v43, 0
    %v174 = vsel %vm64, %v159, 0
    %176 = vmatprep.subr.mxu0 0.0
    %177 = vmatpush1.msra.mxu0 0.0
    %178 = vmatprep.subr.mxu0 0.0
    %179 = vmatpush1.msra.mxu0 0.0
    %180 = vmatprep.subr.mxu0 0.0
    %181 = vmatpush1.msra.mxu0 0.0
    %182 = vmatprep.subr.mxu0 0.0
    %183 = vmatpush1.msra.mxu0 0.0
    %184 = vmatprep.subr.mxu0 0.0
    %185 = vmatpush1.msra.mxu0 0.0
    %186 = vmatprep.subr.mxu0 0.0
    %187 = vmatpush1.msra.mxu0 0.0
    %188 = vmatprep.subr.mxu0 0.0
    %189 = vmatpush1.msra.mxu0 0.0
    %190 = vmatprep.subr.mxu0 0.0
    %191 = vmatpush1.msra.mxu0 0.0
    %192 = vmatprep.subr.mxu0 0.0
    %193 = vmatpush1.msra.mxu0 0.0
    %194 = vmatprep.subr.mxu0 0.0
    %195 = vmatpush1.msra.mxu0 0.0
    %196 = vmatprep.subr.mxu0 0.0
    %197 = vmatpush1.msra.mxu0 0.0
    %198 = vmatprep.subr.mxu0 0.0
    %199 = vmatpush1.msra.mxu0 0.0
    %200 = vmatprep.subr.mxu0 0.0
    %201 = vmatpush1.msra.mxu0 0.0
    %202 = vmatprep.subr.mxu0 0.0
    %203 = vmatpush1.msra.mxu0 0.0
    %204 = vmatprep.subr.mxu0 0.0
    %205 = vmatpush1.msra.mxu0 0.0
    %206 = vmatprep.subr.mxu0 %v174
    %207 = vmatpush1.msra.mxu0 %v172
    %208 = vmatprep.subr.mxu0 0.0
    %209 = vmatpush2.msra.mxu0 0.0
    %210 = vmatprep.subr.mxu0 0.0
    %211 = vmatpush2.msra.mxu0 0.0
    %212 = vmatprep.subr.mxu0 0.0
    %213 = vmatpush2.msra.mxu0 0.0
    %214 = vmatprep.subr.mxu0 0.0
    %215 = vmatpush2.msra.mxu0 0.0
    %216 = vmatprep.subr.mxu0 0.0
    %217 = vmatpush2.msra.mxu0 0.0
    %218 = vmatprep.subr.mxu0 0.0
    %219 = vmatpush2.msra.mxu0 0.0
    %220 = vmatprep.subr.mxu0 0.0
    %221 = vmatpush2.msra.mxu0 0.0
    %222 = vmatprep.subr.mxu0 0.0
    %223 = vmatpush2.msra.mxu0 0.0
    %224 = vmatprep.subr.mxu0 0.0
    %225 = vmatpush2.msra.mxu0 0.0
    %226 = vmatprep.subr.mxu0 0.0
    %227 = vmatpush2.msra.mxu0 0.0
    %228 = vmatprep.subr.mxu0 0.0
    %229 = vmatpush2.msra.mxu0 0.0
    %230 = vmatprep.subr.mxu0 0.0
    %231 = vmatpush2.msra.mxu0 0.0
    %232 = vmatprep.subr.mxu0 0.0
    %233 = vmatpush2.msra.mxu0 0.0
    %234 = vmatprep.subr.mxu0 0.0
    %235 = vmatpush2.msra.mxu0 0.0
    %236 = vmatprep.subr.mxu0 0.0
    %237 = vmatpush2.msra.mxu0 0.0
    %238 = vmatprep.subr.mxu0 0.0
    %239 = vmatpush2.msra.mxu0 0.0
    %240 = vmatprep.mubr.f32.mxu0 0.0
    %241 = vmatmul.mubr.f32.gmra.mxu0 %v161
    %v242 = vpop.f32.mrf.mxu0
    %v243 = vadd.f32 %v136, %v242
    %v244 = vpop.f32.mrf.mxu0
    %v245 = vadd.f32 %v138, %v244
    %246 = vmatprep.mubr.f32.mxu0 0.0
    %247 = vmatmul.mubr.f32.gmra.mxu0 %v164
    %v248 = vpop.f32.mrf.mxu0
    %v249 = vadd.f32 %v142, %v248
    %v250 = vpop.f32.mrf.mxu0
    %v251 = vadd.f32 %v144, %v250
    %252 = vmatprep.mubr.f32.mxu0 0.0
    %253 = vmatmul.mubr.f32.gmra.mxu0 %v167
    %v254 = vpop.f32.mrf.mxu0
    %v255 = vadd.f32 %v148, %v254
    %v256 = vpop.f32.mrf.mxu0
    %v257 = vadd.f32 %v150, %v256
    %258 = vmatprep.mubr.f32.mxu0 0.0
    %259 = vmatmul.mubr.f32.gmra.mxu0 %v170
    %v260 = vpop.f32.mrf.mxu0
    %v261 = vadd.f32 %v154, %v260
    %v262 = vpop.f32.mrf.mxu0
    %v263 = vadd.f32 %v156, %v262
    %264 = vdwg.mxu0
    %v265 = vld [vmem:[%s4] sm:$0xff]
    %v266 = vld [vmem:[%s4 + $0x8] sm:$0xff]
    %v267 = vld [vmem:[%s4 + $0x10] sm:$0xff]
    %v268 = vld [vmem:[%s4 + $0x18] sm:$0xff]
    %270 = vset.pattern.permute.xlu0 0
    %271 = vperm.xlu0 %270, %v265
    %v272 = vpop.permute.xlu0 %271
    %275 = vset.pattern.permute.xlu0 0
    %276 = vperm.xlu0 %275, %v266
    %v277 = vpop.permute.xlu0 %276
    %280 = vset.pattern.permute.xlu0 0
    %281 = vperm.xlu0 %280, %v267
    %v282 = vpop.permute.xlu0 %281
    %285 = vset.pattern.permute.xlu0 0
    %286 = vperm.xlu0 %285, %v268
    %v287 = vpop.permute.xlu0 %286
    %v289 = vadd.f32 %v243, %v272
    %v290 = vadd.f32 %v245, %v272
    %v291 = vadd.f32 %v249, %v277
    %v292 = vadd.f32 %v251, %v277
    %v293 = vadd.f32 %v255, %v282
    %v294 = vadd.f32 %v257, %v282
    %v295 = vadd.f32 %v261, %v287
    %v296 = vadd.f32 %v263, %v287
    %v297 = vand.u32 2147483647, %v289
    %v298 = vand.u32 2147483647, %v290
    %v299 = vand.u32 2147483647, %v291
    %v300 = vand.u32 2147483647, %v292
    %v301 = vand.u32 2147483647, %v293
    %v302 = vand.u32 2147483647, %v294
    %v303 = vand.u32 2147483647, %v295
    %v304 = vand.u32 2147483647, %v296
    %v305 = vadd.f32 %v297, 1.0
    %v306 = vadd.f32 %v298, 1.0
    %v307 = vadd.f32 %v299, 1.0
    %v308 = vadd.f32 %v300, 1.0
    %v309 = vadd.f32 %v301, 1.0
    %v310 = vadd.f32 %v302, 1.0
    %v311 = vadd.f32 %v303, 1.0
    %v312 = vadd.f32 %v304, 1.0
    %v313 = vrcp.pop %v305
    %v314 = vrcp.pop %v306
    %v315 = vrcp.pop %v307
    %v316 = vrcp.pop %v308
    %v317 = vrcp.pop %v309
    %v318 = vrcp.pop %v310
    %v319 = vrcp.pop %v311
    %v320 = vrcp.pop %v312
    %v321 = vmul.f32 %v289, %v313
    %v322 = vmul.f32 %v290, %v314
    %v323 = vmul.f32 %v291, %v315
    %v324 = vmul.f32 %v292, %v316
    %v325 = vmul.f32 %v293, %v317
    %v326 = vmul.f32 %v294, %v318
    %v327 = vmul.f32 %v295, %v319
    %v328 = vmul.f32 %v296, %v320
    %v329 = vld [vmem:[%s5] sm:$0xff]
    %v330 = vld [vmem:[%s5 + $0x8] sm:$0xff]
    %v331 = vld [vmem:[%s5 + $0x10] sm:$0xff]
    %v332 = vld [vmem:[%s5 + $0x18] sm:$0xff]
    %v333 = vld [vmem:[%s6] sm:$0xff]
    %v334 = vld [vmem:[%s6 + $0x8] sm:$0xff]
    %v335 = vld [vmem:[%s6 + $0x10] sm:$0xff]
    %v336 = vld [vmem:[%s6 + $0x18] sm:$0xff]
    %338 = vset.pattern.permute.xlu0 0
    %339 = vperm.xlu0 %338, %v333
    %v340 = vpop.permute.xlu0 %339
    %343 = vset.pattern.permute.xlu0 0
    %344 = vperm.xlu0 %343, %v334
    %v345 = vpop.permute.xlu0 %344
    %348 = vset.pattern.permute.xlu0 0
    %349 = vperm.xlu0 %348, %v335
    %v350 = vpop.permute.xlu0 %349
    %353 = vset.pattern.permute.xlu0 0
    %354 = vperm.xlu0 %353, %v336
    %v355 = vpop.permute.xlu0 %354
    %vm357 = vcmask 261120
    %v359 = vsel %vm357, %v329, 0
    %v362 = vsel %vm357, %v330, 0
    %v365 = vsel %vm357, %v331, 0
    %v368 = vsel %vm357, %v332, 0
    %370 = vmatprep.subr.mxu0 0.0
    %371 = vmatpush1.msra.mxu0 0.0
    %372 = vmatprep.subr.mxu0 0.0
    %373 = vmatpush1.msra.mxu0 0.0
    %374 = vmatprep.subr.mxu0 0.0
    %375 = vmatpush1.msra.mxu0 0.0
    %376 = vmatprep.subr.mxu0 0.0
    %377 = vmatpush1.msra.mxu0 0.0
    %378 = vmatprep.subr.mxu0 0.0
    %379 = vmatpush1.msra.mxu0 0.0
    %380 = vmatprep.subr.mxu0 0.0
    %381 = vmatpush1.msra.mxu0 0.0
    %382 = vmatprep.subr.mxu0 0.0
    %383 = vmatpush1.msra.mxu0 0.0
    %384 = vmatprep.subr.mxu0 0.0
    %385 = vmatpush1.msra.mxu0 0.0
    %386 = vmatprep.subr.mxu0 0.0
    %387 = vmatpush1.msra.mxu0 0.0
    %388 = vmatprep.subr.mxu0 0.0
    %389 = vmatpush1.msra.mxu0 0.0
    %390 = vmatprep.subr.mxu0 0.0
    %391 = vmatpush1.msra.mxu0 0.0
    %392 = vmatprep.subr.mxu0 0.0
    %393 = vmatpush1.msra.mxu0 0.0
    %394 = vmatprep.subr.mxu0 %v328
    %395 = vmatpush1.msra.mxu0 %v327
    %396 = vmatprep.subr.mxu0 %v326
    %397 = vmatpush1.msra.mxu0 %v325
    %398 = vmatprep.subr.mxu0 %v324
    %399 = vmatpush1.msra.mxu0 %v323
    %400 = vmatprep.subr.mxu0 %v322
    %401 = vmatpush1.msra.mxu0 %v321
    %402 = vmatprep.subr.mxu0 0.0
    %403 = vmatpush2.msra.mxu0 0.0
    %404 = vmatprep.subr.mxu0 0.0
    %405 = vmatpush2.msra.mxu0 0.0
    %406 = vmatprep.subr.mxu0 0.0
    %407 = vmatpush2.msra.mxu0 0.0
    %408 = vmatprep.subr.mxu0 0.0
    %409 = vmatpush2.msra.mxu0 0.0
    %410 = vmatprep.subr.mxu0 0.0
    %411 = vmatpush2.msra.mxu0 0.0
    %412 = vmatprep.subr.mxu0 0.0
    %413 = vmatpush2.msra.mxu0 0.0
    %414 = vmatprep.subr.mxu0 0.0
    %415 = vmatpush2.msra.mxu0 0.0
    %416 = vmatprep.subr.mxu0 0.0
    %417 = vmatpush2.msra.mxu0 0.0
    %418 = vmatprep.subr.mxu0 0.0
    %419 = vmatpush2.msra.mxu0 0.0
    %420 = vmatprep.subr.mxu0 0.0
    %421 = vmatpush2.msra.mxu0 0.0
    %422 = vmatprep.subr.mxu0 0.0
    %423 = vmatpush2.msra.mxu0 0.0
    %424 = vmatprep.subr.mxu0 0.0
    %425 = vmatpush2.msra.mxu0 0.0
    %426 = vmatprep.subr.mxu0 0.0
    %427 = vmatpush2.msra.mxu0 0.0
    %428 = vmatprep.subr.mxu0 0.0
    %429 = vmatpush2.msra.mxu0 0.0
    %430 = vmatprep.subr.mxu0 0.0
    %431 = vmatpush2.msra.mxu0 0.0
    %432 = vmatprep.subr.mxu0 0.0
    %433 = vmatpush2.msra.mxu0 0.0
    %434 = vmatprep.mubr.f32.mxu0 0.0
    %435 = vmatmul.mubr.f32.gmra.mxu0 %v359
    %v436 = vpop.f32.mrf.mxu0
    %v437 = vadd.f32 %v340, %v436
    %v438 = vpop.f32.mrf.mxu0
    %v439 = vadd.f32 %v340, %v438
    %440 = vmatprep.mubr.f32.mxu0 0.0
    %441 = vmatmul.mubr.f32.gmra.mxu0 %v362
    %v442 = vpop.f32.mrf.mxu0
    %v443 = vadd.f32 %v345, %v442
    %v444 = vpop.f32.mrf.mxu0
    %v445 = vadd.f32 %v345, %v444
    %446 = vmatprep.mubr.f32.mxu0 0.0
    %447 = vmatmul.mubr.f32.gmra.mxu0 %v365
    %v448 = vpop.f32.mrf.mxu0
    %v449 = vadd.f32 %v350, %v448
    %v450 = vpop.f32.mrf.mxu0
    %v451 = vadd.f32 %v350, %v450
    %452 = vmatprep.mubr.f32.mxu0 0.0
    %453 = vmatmul.mubr.f32.gmra.mxu0 %v368
    %v454 = vpop.f32.mrf.mxu0
    %v455 = vadd.f32 %v355, %v454
    %v456 = vpop.f32.mrf.mxu0
    %v457 = vadd.f32 %v355, %v456
    %458 = vdwg.mxu0
    %v459 = vand.u32 2147483647, %v437
    %v460 = vand.u32 2147483647, %v439
    %v461 = vand.u32 2147483647, %v443
    %v462 = vand.u32 2147483647, %v445
    %v463 = vand.u32 2147483647, %v449
    %v464 = vand.u32 2147483647, %v451
    %v465 = vand.u32 2147483647, %v455
    %v466 = vand.u32 2147483647, %v457
    %v467 = vadd.f32 %v459, 1.0
    %v468 = vadd.f32 %v460, 1.0
    %v469 = vadd.f32 %v461, 1.0
    %v470 = vadd.f32 %v462, 1.0
    %v471 = vadd.f32 %v463, 1.0
    %v472 = vadd.f32 %v464, 1.0
    %v473 = vadd.f32 %v465, 1.0
    %v474 = vadd.f32 %v466, 1.0
    %v475 = vrcp.pop %v467
    %v476 = vrcp.pop %v468
    %v477 = vrcp.pop %v469
    %v478 = vrcp.pop %v470
    %v479 = vrcp.pop %v471
    %v480 = vrcp.pop %v472
    %v481 = vrcp.pop %v473
    %v482 = vrcp.pop %v474
    %v483 = vmul.f32 %v437, %v475
    %v484 = vmul.f32 %v439, %v476
    %v485 = vmul.f32 %v443, %v477
    %v486 = vmul.f32 %v445, %v478
    %v487 = vmul.f32 %v449, %v479
    %v488 = vmul.f32 %v451, %v480
    %v489 = vmul.f32 %v455, %v481
    %v490 = vmul.f32 %v457, %v482
    %v491 = vld [vmem:[%s7] sm:$0xff]
    %v492 = vld [vmem:[%s7 + $0x8] sm:$0xff]
    %v493 = vld [vmem:[%s7 + $0x10] sm:$0xff]
    %v494 = vld [vmem:[%s7 + $0x18] sm:$0xff]
    %v495 = vld [vmem:[%s8] sm:$0xff]
    %v496 = vld [vmem:[%s8 + $0x8] sm:$0xff]
    %v497 = vld [vmem:[%s8 + $0x10] sm:$0xff]
    %v498 = vld [vmem:[%s8 + $0x18] sm:$0xff]
    %500 = vset.pattern.permute.xlu0 0
    %501 = vperm.xlu0 %500, %v495
    %v502 = vpop.permute.xlu0 %501
    %505 = vset.pattern.permute.xlu0 0
    %506 = vperm.xlu0 %505, %v496
    %v507 = vpop.permute.xlu0 %506
    %510 = vset.pattern.permute.xlu0 0
    %511 = vperm.xlu0 %510, %v497
    %v512 = vpop.permute.xlu0 %511
    %515 = vset.pattern.permute.xlu0 0
    %516 = vperm.xlu0 %515, %v498
    %v517 = vpop.permute.xlu0 %516
    %v520 = vsel %vm357, %v491, 0
    %v523 = vsel %vm357, %v492, 0
    %v526 = vsel %vm357, %v493, 0
    %v529 = vsel %vm357, %v494, 0
    %531 = vmatprep.subr.mxu0 0.0
    %532 = vmatpush1.msra.mxu0 0.0
    %533 = vmatprep.subr.mxu0 0.0
    %534 = vmatpush1.msra.mxu0 0.0
    %535 = vmatprep.subr.mxu0 0.0
    %536 = vmatpush1.msra.mxu0 0.0
    %537 = vmatprep.subr.mxu0 0.0
    %538 = vmatpush1.msra.mxu0 0.0
    %539 = vmatprep.subr.mxu0 0.0
    %540 = vmatpush1.msra.mxu0 0.0
    %541 = vmatprep.subr.mxu0 0.0
    %542 = vmatpush1.msra.mxu0 0.0
    %543 = vmatprep.subr.mxu0 0.0
    %544 = vmatpush1.msra.mxu0 0.0
    %545 = vmatprep.subr.mxu0 0.0
    %546 = vmatpush1.msra.mxu0 0.0
    %547 = vmatprep.subr.mxu0 0.0
    %548 = vmatpush1.msra.mxu0 0.0
    %549 = vmatprep.subr.mxu0 0.0
    %550 = vmatpush1.msra.mxu0 0.0
    %551 = vmatprep.subr.mxu0 0.0
    %552 = vmatpush1.msra.mxu0 0.0
    %553 = vmatprep.subr.mxu0 0.0
    %554 = vmatpush1.msra.mxu0 0.0
    %555 = vmatprep.subr.mxu0 %v490
    %556 = vmatpush1.msra.mxu0 %v489
    %557 = vmatprep.subr.mxu0 %v488
    %558 = vmatpush1.msra.mxu0 %v487
    %559 = vmatprep.subr.mxu0 %v486
    %560 = vmatpush1.msra.mxu0 %v485
    %561 = vmatprep.subr.mxu0 %v484
    %562 = vmatpush1.msra.mxu0 %v483
    %563 = vmatprep.subr.mxu0 0.0
    %564 = vmatpush2.msra.mxu0 0.0
    %565 = vmatprep.subr.mxu0 0.0
    %566 = vmatpush2.msra.mxu0 0.0
    %567 = vmatprep.subr.mxu0 0.0
    %568 = vmatpush2.msra.mxu0 0.0
    %569 = vmatprep.subr.mxu0 0.0
    %570 = vmatpush2.msra.mxu0 0.0
    %571 = vmatprep.subr.mxu0 0.0
    %572 = vmatpush2.msra.mxu0 0.0
    %573 = vmatprep.subr.mxu0 0.0
    %574 = vmatpush2.msra.mxu0 0.0
    %575 = vmatprep.subr.mxu0 0.0
    %576 = vmatpush2.msra.mxu0 0.0
    %577 = vmatprep.subr.mxu0 0.0
    %578 = vmatpush2.msra.mxu0 0.0
    %579 = vmatprep.subr.mxu0 0.0
    %580 = vmatpush2.msra.mxu0 0.0
    %581 = vmatprep.subr.mxu0 0.0
    %582 = vmatpush2.msra.mxu0 0.0
    %583 = vmatprep.subr.mxu0 0.0
    %584 = vmatpush2.msra.mxu0 0.0
    %585 = vmatprep.subr.mxu0 0.0
    %586 = vmatpush2.msra.mxu0 0.0
    %587 = vmatprep.subr.mxu0 0.0
    %588 = vmatpush2.msra.mxu0 0.0
    %589 = vmatprep.subr.mxu0 0.0
    %590 = vmatpush2.msra.mxu0 0.0
    %591 = vmatprep.subr.mxu0 0.0
    %592 = vmatpush2.msra.mxu0 0.0
    %593 = vmatprep.subr.mxu0 0.0
    %594 = vmatpush2.msra.mxu0 0.0
    %595 = vmatprep.mubr.f32.mxu0 0.0
    %596 = vmatmul.mubr.f32.gmra.mxu0 %v520
    %v597 = vpop.f32.mrf.mxu0
    %v598 = vadd.f32 %v502, %v597
    %v599 = vpop.f32.mrf.mxu0
    %v600 = vadd.f32 %v502, %v599
    %601 = vmatprep.mubr.f32.mxu0 0.0
    %602 = vmatmul.mubr.f32.gmra.mxu0 %v523
    %v603 = vpop.f32.mrf.mxu0
    %v604 = vadd.f32 %v507, %v603
    %v605 = vpop.f32.mrf.mxu0
    %v606 = vadd.f32 %v507, %v605
    %607 = vmatprep.mubr.f32.mxu0 0.0
    %608 = vmatmul.mubr.f32.gmra.mxu0 %v526
    %v609 = vpop.f32.mrf.mxu0
    %v610 = vadd.f32 %v512, %v609
    %v611 = vpop.f32.mrf.mxu0
    %v612 = vadd.f32 %v512, %v611
    %613 = vmatprep.mubr.f32.mxu0 0.0
    %614 = vmatmul.mubr.f32.gmra.mxu0 %v529
    %v615 = vpop.f32.mrf.mxu0
    %v616 = vadd.f32 %v517, %v615
    %v617 = vpop.f32.mrf.mxu0
    %v618 = vadd.f32 %v517, %v617
    %619 = vdwg.mxu0
    %v620 = vand.u32 2147483647, %v598
    %v621 = vand.u32 2147483647, %v600
    %v622 = vand.u32 2147483647, %v604
    %v623 = vand.u32 2147483647, %v606
    %v624 = vand.u32 2147483647, %v610
    %v625 = vand.u32 2147483647, %v612
    %v626 = vand.u32 2147483647, %v616
    %v627 = vand.u32 2147483647, %v618
    %v628 = vadd.f32 %v620, 1.0
    %v629 = vadd.f32 %v621, 1.0
    %v630 = vadd.f32 %v622, 1.0
    %v631 = vadd.f32 %v623, 1.0
    %v632 = vadd.f32 %v624, 1.0
    %v633 = vadd.f32 %v625, 1.0
    %v634 = vadd.f32 %v626, 1.0
    %v635 = vadd.f32 %v627, 1.0
    %v636 = vrcp.pop %v628
    %v637 = vrcp.pop %v629
    %v638 = vrcp.pop %v630
    %v639 = vrcp.pop %v631
    %v640 = vrcp.pop %v632
    %v641 = vrcp.pop %v633
    %v642 = vrcp.pop %v634
    %v643 = vrcp.pop %v635
    %v644 = vmul.f32 %v598, %v636
    %v645 = vmul.f32 %v600, %v637
    %v646 = vmul.f32 %v604, %v638
    %v647 = vmul.f32 %v606, %v639
    %v648 = vmul.f32 %v610, %v640
    %v649 = vmul.f32 %v612, %v641
    %v650 = vmul.f32 %v616, %v642
    %v651 = vmul.f32 %v618, %v643
    %v652 = vld [vmem:[%s9] sm:$0xf]
    %v653 = vld [vmem:[%s10] sm:$0xf]
    %655 = vset.pattern.permute.xlu0 0
    %656 = vperm.xlu0 %655, %v653
    %v657 = vpop.permute.xlu0 %656
    %v660 = vsel %vm357, %v652, 0
    %662 = vmatprep.subr.mxu0 0.0
    %663 = vmatpush1.msra.mxu0 0.0
    %664 = vmatprep.subr.mxu0 0.0
    %665 = vmatpush1.msra.mxu0 0.0
    %666 = vmatprep.subr.mxu0 0.0
    %667 = vmatpush1.msra.mxu0 0.0
    %668 = vmatprep.subr.mxu0 0.0
    %669 = vmatpush1.msra.mxu0 0.0
    %670 = vmatprep.subr.mxu0 0.0
    %671 = vmatpush1.msra.mxu0 0.0
    %672 = vmatprep.subr.mxu0 0.0
    %673 = vmatpush1.msra.mxu0 0.0
    %674 = vmatprep.subr.mxu0 0.0
    %675 = vmatpush1.msra.mxu0 0.0
    %676 = vmatprep.subr.mxu0 0.0
    %677 = vmatpush1.msra.mxu0 0.0
    %678 = vmatprep.subr.mxu0 0.0
    %679 = vmatpush1.msra.mxu0 0.0
    %680 = vmatprep.subr.mxu0 0.0
    %681 = vmatpush1.msra.mxu0 0.0
    %682 = vmatprep.subr.mxu0 0.0
    %683 = vmatpush1.msra.mxu0 0.0
    %684 = vmatprep.subr.mxu0 0.0
    %685 = vmatpush1.msra.mxu0 0.0
    %686 = vmatprep.subr.mxu0 %v651
    %687 = vmatpush1.msra.mxu0 %v650
    %688 = vmatprep.subr.mxu0 %v649
    %689 = vmatpush1.msra.mxu0 %v648
    %690 = vmatprep.subr.mxu0 %v647
    %691 = vmatpush1.msra.mxu0 %v646
    %692 = vmatprep.subr.mxu0 %v645
    %693 = vmatpush1.msra.mxu0 %v644
    %694 = vmatprep.subr.mxu0 0.0
    %695 = vmatpush2.msra.mxu0 0.0
    %696 = vmatprep.subr.mxu0 0.0
    %697 = vmatpush2.msra.mxu0 0.0
    %698 = vmatprep.subr.mxu0 0.0
    %699 = vmatpush2.msra.mxu0 0.0
    %700 = vmatprep.subr.mxu0 0.0
    %701 = vmatpush2.msra.mxu0 0.0
    %702 = vmatprep.subr.mxu0 0.0
    %703 = vmatpush2.msra.mxu0 0.0
    %704 = vmatprep.subr.mxu0 0.0
    %705 = vmatpush2.msra.mxu0 0.0
    %706 = vmatprep.subr.mxu0 0.0
    %707 = vmatpush2.msra.mxu0 0.0
    %708 = vmatprep.subr.mxu0 0.0
    %709 = vmatpush2.msra.mxu0 0.0
    %710 = vmatprep.subr.mxu0 0.0
    %711 = vmatpush2.msra.mxu0 0.0
    %712 = vmatprep.subr.mxu0 0.0
    %713 = vmatpush2.msra.mxu0 0.0
    %714 = vmatprep.subr.mxu0 0.0
    %715 = vmatpush2.msra.mxu0 0.0
    %716 = vmatprep.subr.mxu0 0.0
    %717 = vmatpush2.msra.mxu0 0.0
    %718 = vmatprep.subr.mxu0 0.0
    %719 = vmatpush2.msra.mxu0 0.0
    %720 = vmatprep.subr.mxu0 0.0
    %721 = vmatpush2.msra.mxu0 0.0
    %722 = vmatprep.subr.mxu0 0.0
    %723 = vmatpush2.msra.mxu0 0.0
    %724 = vmatprep.subr.mxu0 0.0
    %725 = vmatpush2.msra.mxu0 0.0
    %726 = vmatprep.mubr.f32.mxu0 0.0
    %727 = vmatmul.mubr.f32.gmra.mxu0 %v660
    %v728 = vpop.f32.mrf.mxu0
    %v729 = vadd.f32 %v657, %v728
    %v730 = vpop.f32.mrf.mxu0
    %v731 = vadd.f32 %v657, %v730
    %732 = vdwg.mxu0
    %v735 = vcombine.low %v729, %v731
    %737 = vst [vmem:[#allocation2] sm:$0xff] %v735
    // Predicated region
    $region46: #{tpu_custom_call.1} parent=1 // pred_check
      _
    $region47: #{tpu_custom_call.1} parent=1 // pred_check_branch
      %739 = sbr.rel (0) target = $region49
    $region48: #{tpu_custom_call.1} parent=1 // pred_region
      %s741 = ssub.s32 128, 128
      %742 = vsyncadd [#allocation3], %s741
      %s744 = sshll.u32 [#allocation2], 4
      %s745 = int_to_ptr.vmem [resolvable:$true] %s744
      %747 = dma.vmem_to_hbm [thread:$0]  %s745, 128, %s11, [#allocation3]
    $region49: #{tpu_custom_call.1} parent=1 // pred_fallthru
      _
    // Predicated region
    $region50: #{tpu_custom_call.1} parent=1 // pred_check
      _
    $region51: #{tpu_custom_call.1} parent=1 // pred_check_branch
      %749 = sbr.rel (0) target = $region53
    $region52: #{tpu_custom_call.1} parent=1 // pred_region
      %750 = dma.done [#allocation3], 128
    $region53: #{tpu_custom_call.1} parent=1 // pred_fallthru
      _
    %751 = vsyncpa [#allocation3], 1

</llo_original>
